<compile_context>
chip_gen: v7x
topology: tpu7x:2x2x1
jax: 0.10.0
libtpu: 0.0.40
codegen_flags: <defaults>
</compile_context>

<pallas_src>
import math

import jax
import jax.numpy as jnp
from jax.experimental import pallas as pl
from jax.experimental.pallas import tpu as pltpu


LEAKY_SLOPE = 0.01        # nn.LeakyReLU default
BN_EPS = 1e-5             # nn.BatchNorm1d default
HEAD_WIDTH = 128          # lane-dense head width; q lives in lanes 0..A-1
FUSED_MAX_BATCH = 2048    # above this, use the batch-tiled 3-stage path
DEFAULT_BATCH_TILE = 512  # batch tile for the tiled path (~2 MB live per tile)

_SMEM = pl.BlockSpec(memory_space=pltpu.MemorySpace.SMEM)
_VMEM = pl.BlockSpec(memory_space=pltpu.MemorySpace.VMEM)
_VMEM_LIMIT = 32 * 1024 * 1024   # safe on v5e/v6e/v7x; raises v5e's 16 MiB default


def _leaky_relu(x):
    # max(x, slope*x): 2 VPU ops/element, identical to where(x>0,...) for 0<slope<1.
    return jnp.maximum(x, LEAKY_SLOPE * x)


def _mm(a, w_ref, b_ref):
    w = w_ref[...]
    # Activations cast to the stored weight dtype (f32 or bf16); MXU accumulates f32.
    return jnp.dot(a.astype(w.dtype), w, preferred_element_type=jnp.float32) + b_ref[...]


# ---------------------------------------------------------------------------
# Fused single-block kernel (whole batch resident in VMEM).
# ---------------------------------------------------------------------------

def _fused_kernel(bv_ref, inv_n_ref, x_ref,
                  w1_ref, b1_ref, g1_ref, beta1_ref,
                  w2_ref, b2_ref, g2_ref, beta2_ref,
                  wh1_ref, bh1_ref, wh2_ref, bh2_ref,
                  out_ref):
    x = x_ref[...]
    pb = x.shape[0]
    bv = bv_ref[0, 0]          # valid batch rows (SMEM scalar)
    inv_n = inv_n_ref[0, 0]    # 1 / valid batch rows (SMEM scalar)

    # Rows >= bv are zero padding added by the wrapper; exclude them from the
    # BatchNorm statistics so numerics match the un-padded module.
    row_valid = jax.lax.broadcasted_iota(jnp.int32, (pb, 1), 0) < bv

    def batchnorm(h, g_ref, beta_ref):
        # One reduction pass (sum & sum-of-squares), then a 2-op/elem apply via
        # precomputed per-feature scale/shift.
        hm = jnp.where(row_valid, h, 0.0)
        s1 = jnp.sum(hm, axis=0, keepdims=True)
        s2 = jnp.sum(hm * hm, axis=0, keepdims=True)
        mu = s1 * inv_n
        var = jnp.maximum(s2 * inv_n - mu * mu, 0.0)          # biased variance
        scale = g_ref[...] * jax.lax.rsqrt(var + BN_EPS)       # (1, C)
        shift = beta_ref[...] - mu * scale                     # (1, C)
        # TODO(synk): if a bundle dump shows these axis-0 reductions on the
        # critical path, compute s1/s2 as a (1, Bp) valid-row vector matmul
        # against h and h*h to shift the work onto the (slack) MXU.
        return h * scale + shift

    # features: Linear -> LeakyReLU -> BN, twice
    h = batchnorm(_leaky_relu(_mm(x, w1_ref, b1_ref)), g1_ref, beta1_ref)
    feats = batchnorm(_leaky_relu(_mm(h, w2_ref, b2_ref)), g2_ref, beta2_ref)

    # Fused V/A head: both hidden layers side by side (256 lanes). The dueling
    # combine is folded into wh2/bh2 at init, so the tail is one lane-dense
    # matmul and an unmasked (Bp, 128) store; q lives in lanes 0..A-1.
    hh = _leaky_relu(_mm(feats, wh1_ref, bh1_ref))
    out_ref[...] = _mm(hh, wh2_ref, bh2_ref)


# ---------------------------------------------------------------------------
# Batch-tiled 3-stage path for large batches.
#   Stage 1: h1 = leaky(x @ w1 + b1), accumulate BN1 sums (arbitrary axis)
#   Stage 2: h2 = leaky(BN1(h1) @ w2 + b2), accumulate BN2 sums
#   Stage 3: q  = BN2(h2) -> fused head (parallel axis -> v7x megacore)
# Stats are finalized into (1,C) scale/shift in tiny JAX glue between stages.
# ---------------------------------------------------------------------------

def _stage1_kernel(bv_ref, x_ref, w1_ref, b1_ref, h1_ref, s1_ref, s2_ref):
    i = pl.program_id(0)
    h = _leaky_relu(_mm(x_ref[...], w1_ref, b1_ref))
    h1_ref[...] = h.astype(h1_ref.dtype)

    tb = h.shape[0]
    row = jax.lax.broadcasted_iota(jnp.int32, (tb, 1), 0) + i * tb
    hm = jnp.where(row < bv_ref[0, 0], h, 0.0)

    @pl.when(i == 0)
    def _():
        s1_ref[...] = jnp.zeros_like(s1_ref)
        s2_ref[...] = jnp.zeros_like(s2_ref)

    s1_ref[...] += jnp.sum(hm, axis=0, keepdims=True)
    s2_ref[...] += jnp.sum(hm * hm, axis=0, keepdims=True)


def _stage2_kernel(bv_ref, h1_ref, sc1_ref, sh1_ref, w2_ref, b2_ref,
                   h2_ref, s1_ref, s2_ref):
    i = pl.program_id(0)
    h1n = h1_ref[...].astype(jnp.float32) * sc1_ref[...] + sh1_ref[...]
    h = _leaky_relu(_mm(h1n, w2_ref, b2_ref))
    h2_ref[...] = h.astype(h2_ref.dtype)

    tb = h.shape[0]
    row = jax.lax.broadcasted_iota(jnp.int32, (tb, 1), 0) + i * tb
    hm = jnp.where(row < bv_ref[0, 0], h, 0.0)

    @pl.when(i == 0)
    def _():
        s1_ref[...] = jnp.zeros_like(s1_ref)
        s2_ref[...] = jnp.zeros_like(s2_ref)

    s1_ref[...] += jnp.sum(hm, axis=0, keepdims=True)
    s2_ref[...] += jnp.sum(hm * hm, axis=0, keepdims=True)


def _stage3_kernel(h2_ref, sc2_ref, sh2_ref, wh1_ref, bh1_ref, wh2_ref, bh2_ref,
                   out_ref):
    h2n = h2_ref[...].astype(jnp.float32) * sc2_ref[...] + sh2_ref[...]
    hh = _leaky_relu(_mm(h2n, wh1_ref, bh1_ref))
    out_ref[...] = _mm(hh, wh2_ref, bh2_ref)


def _finalize_bn(s1, s2, g, beta, n):
    """Tiny (1,C) glue: accumulated (sum, sum_sq) -> per-feature scale/shift."""
    inv_n = 1.0 / float(n)
    mu = s1 * inv_n
    var = jnp.maximum(s2 * inv_n - mu * mu, 0.0)
    scale = g * jax.lax.rsqrt(var + BN_EPS)
    shift = beta - mu * scale
    return scale, shift


# ---------------------------------------------------------------------------
# Wrapper
# ---------------------------------------------------------------------------

def dueling_dqn_forward(x, params, output_size, *, use_bf16_matmul=True,
                        batch_tile=DEFAULT_BATCH_TILE, force_tiled=False):
    """x: (B, input_size) float32. Returns q: (B, output_size) float32."""
    batch, input_size = x.shape
    assert output_size <= HEAD_WIDTH, "output_size must fit in the head slab"

    mm_dtype = jnp.bfloat16 if use_bf16_matmul else jnp.float32
    # bf16 vregs pack 16 sublanes -> 16-row alignment avoids a relayout when
    # casting activations before each MXU push; f32 only needs 8.
    row_align = 16 if use_bf16_matmul else 8

    # Weight casts; under jit these are hoisted/constant-folded per dtype.
    w1 = params["w1"].astype(mm_dtype); b1 = params["b1"]
    g1, beta1 = params["g1"], params["beta1"]
    w2 = params["w2"].astype(mm_dtype); b2 = params["b2"]
    g2, beta2 = params["g2"], params["beta2"]
    wh1 = params["w_h1"].astype(mm_dtype); bh1 = params["b_h1"]
    wh2 = params["w_h2"].astype(mm_dtype); bh2 = params["b_h2"]

    bv = jnp.array([[batch]], dtype=jnp.int32)

    if (not force_tiled) and batch <= FUSED_MAX_BATCH:
        # ----- fused single-block path (small / medium batches) -----
        padded_batch = max(row_align, ((batch + row_align - 1) // row_align) * row_align)
        if padded_batch != batch:
            x = jnp.pad(x, ((0, padded_batch - batch), (0, 0)))
        inv_n = jnp.array([[1.0 / batch]], dtype=jnp.float32)
        args = (bv, inv_n, x,
                w1, b1, g1, beta1, w2, b2, g2, beta2, wh1, bh1, wh2, bh2)
        out = pl.pallas_call(
            _fused_kernel,
            out_shape=jax.ShapeDtypeStruct((padded_batch, HEAD_WIDTH), jnp.float32),
            in_specs=[_SMEM, _SMEM] + [_VMEM] * (len(args) - 2),
            out_specs=_VMEM,
            compiler_params=pltpu.CompilerParams(vmem_limit_bytes=_VMEM_LIMIT),
        )(*args)
        return out[:batch, :output_size]

    # ----- batch-tiled 3-stage path (training-scale batches) -----
    tb = batch_tile
    assert tb % 16 == 0, "batch_tile must be a multiple of 16"
    padded_batch = ((batch + tb - 1) // tb) * tb
    if padded_batch != batch:
        x = jnp.pad(x, ((0, padded_batch - batch), (0, 0)))
    nt = padded_batch // tb

    def tile(cols):
        return pl.BlockSpec((tb, cols), lambda i: (i, 0))

    def const(shape):
        return pl.BlockSpec(shape, lambda i: (0, 0))

    cp_arb = pltpu.CompilerParams(dimension_semantics=("arbitrary",),
                                  vmem_limit_bytes=_VMEM_LIMIT)
    cp_par = pltpu.CompilerParams(dimension_semantics=("parallel",),
                                  vmem_limit_bytes=_VMEM_LIMIT)

    # Stage 1
    h1, s1_1, s2_1 = pl.pallas_call(
        _stage1_kernel,
        grid=(nt,),
        out_shape=(jax.ShapeDtypeStruct((padded_batch, 128), mm_dtype),
                   jax.ShapeDtypeStruct((1, 128), jnp.float32),
                   jax.ShapeDtypeStruct((1, 128), jnp.float32)),
        in_specs=[_SMEM, tile(input_size),
                  const((input_size, 128)), const((1, 128))],
        out_specs=(tile(128), const((1, 128)), const((1, 128))),
        compiler_params=cp_arb,
    )(bv, x, w1, b1)
    sc1, sh1 = _finalize_bn(s1_1, s2_1, g1, beta1, batch)

    # Stage 2
    h2, s1_2, s2_2 = pl.pallas_call(
        _stage2_kernel,
        grid=(nt,),
        out_shape=(jax.ShapeDtypeStruct((padded_batch, 256), mm_dtype),
                   jax.ShapeDtypeStruct((1, 256), jnp.float32),
                   jax.ShapeDtypeStruct((1, 256), jnp.float32)),
        in_specs=[_SMEM, tile(128), const((1, 128)), const((1, 128)),
                  const((128, 256)), const((1, 256))],
        out_specs=(tile(256), const((1, 256)), const((1, 256))),
        compiler_params=cp_arb,
    )(bv, h1, sc1, sh1, w2, b2)
    sc2, sh2 = _finalize_bn(s1_2, s2_2, g2, beta2, batch)

    # Stage 3 (independent per tile -> parallel for v7x megacore)
    out = pl.pallas_call(
        _stage3_kernel,
        grid=(nt,),
        out_shape=jax.ShapeDtypeStruct((padded_batch, HEAD_WIDTH), jnp.float32),
        in_specs=[tile(256), const((1, 256)), const((1, 256)),
                  const((256, 256)), const((1, 256)),
                  const((256, HEAD_WIDTH)), const((1, HEAD_WIDTH))],
        out_specs=tile(HEAD_WIDTH),
        compiler_params=cp_par,
    )(h2, sc2, sh2, wh1, bh1, wh2, bh2)

    return out[:batch, :output_size]


# ---------------------------------------------------------------------------
# Deterministic parameter construction (matches PyTorch init distributions).
# ---------------------------------------------------------------------------

def _linear_init(key, fan_in, fan_out):
    """nn.Linear default: U(-1/sqrt(in), 1/sqrt(in)) for weight and bias."""
    kw, kb = jax.random.split(key)
    bound = 1.0 / math.sqrt(fan_in)
    w = jax.random.uniform(kw, (fan_in, fan_out), jnp.float32, -bound, bound)
    b = jax.random.uniform(kb, (1, fan_out), jnp.float32, -bound, bound)
    return w, b


def _scale_noise(key, size):
    x = jax.random.normal(key, (size,), jnp.float32)
    return jnp.sign(x) * jnp.sqrt(jnp.abs(x))


def _noisy_linear_init(key, fan_in, fan_out, std_init=0.4):
    """NoisyLinear: effective (W, b) = (mu + sigma*eps), folded here."""
    kwm, kbm, kin, kout = jax.random.split(key, 4)
    mu_range = 1.0 / math.sqrt(fan_in)
    w_mu = jax.random.uniform(kwm, (fan_in, fan_out), jnp.float32, -mu_range, mu_range)
    b_mu = jax.random.uniform(kbm, (fan_out,), jnp.float32, -mu_range, mu_range)
    w_sigma = jnp.full((fan_in, fan_out), std_init / math.sqrt(fan_in), jnp.float32)
    b_sigma = jnp.full((fan_out,), std_init / math.sqrt(fan_out), jnp.float32)
    eps_in = _scale_noise(kin, fan_in)
    eps_out = _scale_noise(kout, fan_out)
    w_eff = w_mu + w_sigma * (eps_in[:, None] * eps_out[None, :])
    b_eff = (b_mu + b_sigma * eps_out)[None, :]
    return w_eff, b_eff


def init_params(key, input_size, output_size):
    keys = jax.random.split(key, 6)
    w1, b1 = _linear_init(keys[0], input_size, 128)
    w2, b2 = _linear_init(keys[1], 128, 256)
    wv1, bv1 = _noisy_linear_init(keys[2], 256, 128)
    wv2, bv2 = _noisy_linear_init(keys[3], 128, 1)
    wa1, ba1 = _noisy_linear_init(keys[4], 256, 128)
    wa2, ba2 = _noisy_linear_init(keys[5], 128, output_size)

    # Fused head hidden layer: value & advantage hidden units side by side.
    w_h1 = jnp.concatenate([wv1, wa1], axis=1)          # (256, 256)
    b_h1 = jnp.concatenate([bv1, ba1], axis=1)          # (1, 256)

    # Fused head output layer with the dueling combine folded in:
    #   q[:, j] = hh_v @ wv2 + hh_a @ (wa2[:, j] - mean_k wa2[:, k])
    #             + bv2 + ba2[j] - mean(ba2)
    # so the kernel tail is a single lane-dense (256, 128) matmul.
    wa2_c = wa2 - jnp.mean(wa2, axis=1, keepdims=True)                 # (128, A)
    w_h2 = jnp.zeros((256, HEAD_WIDTH), jnp.float32)
    w_h2 = w_h2.at[:128, :output_size].set(
        jnp.broadcast_to(wv2, (128, output_size)))                     # value path
    w_h2 = w_h2.at[128:, :output_size].set(wa2_c)                      # adv path
    b_h2 = jnp.zeros((1, HEAD_WIDTH), jnp.float32)
    b_h2 = b_h2.at[:, :output_size].set(
        bv2 + ba2 - jnp.mean(ba2, axis=1, keepdims=True))

    return dict(
        w1=w1, b1=b1,
        g1=jnp.ones((1, 128), jnp.float32), beta1=jnp.zeros((1, 128), jnp.float32),
        w2=w2, b2=b2,
        g2=jnp.ones((1, 256), jnp.float32), beta2=jnp.zeros((1, 256), jnp.float32),
        w_h1=w_h1, b_h1=b_h1, w_h2=w_h2, b_h2=b_h2,
        # raw (unfused) head weights kept only for the pure-JAX reference check
        wv1=wv1, bv1=bv1, wv2=wv2, bv2=bv2,
        wa1=wa1, ba1=ba1, wa2=wa2, ba2=ba2,
    )


# ---------------------------------------------------------------------------
# Pure-JAX reference (unfused, two-pass BN) for correctness checks.
# ---------------------------------------------------------------------------

def reference_forward(x, p):
    def leaky(v):
        return jnp.where(v > 0, v, LEAKY_SLOPE * v)

    def bn(h, g, beta):
        mu = jnp.mean(h, axis=0, keepdims=True)
        var = jnp.mean((h - mu) ** 2, axis=0, keepdims=True)
        return (h - mu) * jax.lax.rsqrt(var + BN_EPS) * g + beta

    h = bn(leaky(x @ p["w1"] + p["b1"]), p["g1"], p["beta1"])
    f = bn(leaky(h @ p["w2"] + p["b2"]), p["g2"], p["beta2"])
    v = leaky(f @ p["wv1"] + p["bv1"]) @ p["wv2"] + p["bv2"]
    a = leaky(f @ p["wa1"] + p["ba1"]) @ p["wa2"] + p["ba2"]
    return v + (a - jnp.mean(a, axis=1, keepdims=True))


if __name__ == "__main__":
    input_size = 32
    output_size = 8

    root = jax.random.PRNGKey(0)
    k_params, k_x1, k_x2 = jax.random.split(root, 3)
    params = init_params(k_params, input_size, output_size)

    # ---- small batch: fused single-block kernel ----
    x_small = jax.random.normal(k_x1, (4, input_size), jnp.float32)
    q_ref_small = reference_forward(x_small, params)

    q_f32 = dueling_dqn_forward(x_small, params, output_size, use_bf16_matmul=False)
    jax.block_until_ready(q_f32)
    assert q_f32.shape == (4, output_size) and q_f32.dtype == jnp.float32
    assert jnp.allclose(q_f32, q_ref_small, rtol=1e-3, atol=1e-3), "f32 fused mismatch"

    q_bf16 = dueling_dqn_forward(x_small, params, output_size)   # bf16 default
    jax.block_until_ready(q_bf16)
    assert q_bf16.shape == (4, output_size)
    assert jnp.allclose(q_bf16, q_ref_small, rtol=5e-2, atol=5e-2), "bf16 fused mismatch"

    # ---- larger batch: batch-tiled 3-stage path (small tile forced so the grid
    #      has several steps and the ragged-tail BN masking is exercised) ----
    x_big = jax.random.normal(k_x2, (200, input_size), jnp.float32)
    q_ref_big = reference_forward(x_big, params)

    q_tiled_f32 = dueling_dqn_forward(x_big, params, output_size,
                                      use_bf16_matmul=False,
                                      batch_tile=64, force_tiled=True)
    jax.block_until_ready(q_tiled_f32)
    assert q_tiled_f32.shape == (200, output_size)
    assert jnp.allclose(q_tiled_f32, q_ref_big, rtol=1e-3, atol=1e-3), "f32 tiled mismatch"

    q_tiled_bf16 = dueling_dqn_forward(x_big, params, output_size,
                                       batch_tile=64, force_tiled=True)
    jax.block_until_ready(q_tiled_bf16)
    assert jnp.allclose(q_tiled_bf16, q_ref_big, rtol=5e-2, atol=5e-2), "bf16 tiled mismatch"

    print("KERNEL_OK")
</pallas_src>

<mosaic_0001>
module attributes {stable_mosaic.version = 11 : i64} {
  func.func @_fused_kernel(%arg0: memref<1x1xi32, #tpu.memory_space<smem>>, %arg1: memref<1x1xf32, #tpu.memory_space<smem>>, %arg2: memref<8x32xf32, #tpu.memory_space<vmem>>, %arg3: memref<32x128xf32, #tpu.memory_space<vmem>>, %arg4: memref<1x128xf32, #tpu.memory_space<vmem>>, %arg5: memref<1x128xf32, #tpu.memory_space<vmem>>, %arg6: memref<1x128xf32, #tpu.memory_space<vmem>>, %arg7: memref<128x256xf32, #tpu.memory_space<vmem>>, %arg8: memref<1x256xf32, #tpu.memory_space<vmem>>, %arg9: memref<1x256xf32, #tpu.memory_space<vmem>>, %arg10: memref<1x256xf32, #tpu.memory_space<vmem>>, %arg11: memref<256x256xf32, #tpu.memory_space<vmem>>, %arg12: memref<1x256xf32, #tpu.memory_space<vmem>>, %arg13: memref<256x128xf32, #tpu.memory_space<vmem>>, %arg14: memref<1x128xf32, #tpu.memory_space<vmem>>, %arg15: memref<8x128xf32, #tpu.memory_space<vmem>>) attributes {dimension_semantics = [], scalar_prefetch = 0 : i64, scratch_operands = 0 : i64, tpu.core_type = #tpu.core_type<tc>} {
    %c0 = arith.constant 0 : index
    %c0_0 = arith.constant 0 : index
    %0 = vector.load %arg2[%c0, %c0_0] : memref<8x32xf32, #tpu.memory_space<vmem>>, vector<8x32xf32>
    %c0_1 = arith.constant 0 : index
    %c0_2 = arith.constant 0 : index
    %1 = memref.load %arg0[%c0_1, %c0_2] : memref<1x1xi32, #tpu.memory_space<smem>>
    %c0_3 = arith.constant 0 : index
    %c0_4 = arith.constant 0 : index
    %2 = memref.load %arg1[%c0_3, %c0_4] : memref<1x1xf32, #tpu.memory_space<smem>>
    %3 = tpu.iota {dimensions = array<i32: 0>} : vector<8x1xi32>
    %4 = vector.broadcast %1 : i32 to vector<8x1xi32>
    %5 = arith.cmpi slt, %3, %4 : vector<8x1xi32>
    %c0_5 = arith.constant 0 : index
    %c0_6 = arith.constant 0 : index
    %6 = vector.load %arg3[%c0_5, %c0_6] : memref<32x128xf32, #tpu.memory_space<vmem>>, vector<32x128xf32>
    %cst = arith.constant dense<0.000000e+00> : vector<8x128xf32>
    %7 = tpu.matmul %0, %6, %cst {dimension_numbers = #tpu.dot_dimension_numbers<[1], [0], [0], [1], [0, 0, 1, 1], [], []>} : vector<8x32xf32>, vector<32x128xf32>, vector<8x128xf32> -> vector<8x128xf32>
    %c0_7 = arith.constant 0 : index
    %c0_8 = arith.constant 0 : index
    %8 = vector.load %arg4[%c0_7, %c0_8] : memref<1x128xf32, #tpu.memory_space<vmem>>, vector<1x128xf32>
    %9 = vector.broadcast %8 : vector<1x128xf32> to vector<8x128xf32>
    %10 = arith.addf %7, %9 : vector<8x128xf32>
    %cst_9 = arith.constant 0.00999999977 : f32
    %11 = vector.broadcast %cst_9 : f32 to vector<8x128xf32>
    %12 = arith.mulf %11, %10 : vector<8x128xf32>
    %13 = arith.maximumf %10, %12 : vector<8x128xf32>
    %cst_10 = arith.constant 0.000000e+00 : f32
    %14 = vector.shape_cast %5 : vector<8x1xi1> to vector<8x1xi1>
    %15 = vector.broadcast %14 : vector<8x1xi1> to vector<8x128xi1>
    %16 = vector.broadcast %cst_10 : f32 to vector<8x128xf32>
    %17 = arith.select %15, %13, %16 : vector<8x128xi1>, vector<8x128xf32>
    %cst_11 = arith.constant dense<0.000000e+00> : vector<128xf32>
    %18 = vector.multi_reduction <add>, %17, %cst_11 [0] : vector<8x128xf32> to vector<128xf32>
    %19 = vector.shape_cast %18 : vector<128xf32> to vector<1x128xf32>
    %20 = arith.mulf %17, %17 : vector<8x128xf32>
    %cst_12 = arith.constant dense<0.000000e+00> : vector<128xf32>
    %21 = vector.multi_reduction <add>, %20, %cst_12 [0] : vector<8x128xf32> to vector<128xf32>
    %22 = vector.shape_cast %21 : vector<128xf32> to vector<1x128xf32>
    %23 = vector.broadcast %2 : f32 to vector<1x128xf32>
    %24 = arith.mulf %19, %23 : vector<1x128xf32>
    %25 = vector.broadcast %2 : f32 to vector<1x128xf32>
    %26 = arith.mulf %22, %25 : vector<1x128xf32>
    %27 = arith.mulf %24, %24 : vector<1x128xf32>
    %28 = arith.subf %26, %27 : vector<1x128xf32>
    %cst_13 = arith.constant 0.000000e+00 : f32
    %29 = vector.broadcast %cst_13 : f32 to vector<1x128xf32>
    %30 = arith.maximumf %28, %29 : vector<1x128xf32>
    %c0_14 = arith.constant 0 : index
    %c0_15 = arith.constant 0 : index
    %31 = vector.load %arg5[%c0_14, %c0_15] : memref<1x128xf32, #tpu.memory_space<vmem>>, vector<1x128xf32>
    %cst_16 = arith.constant 9.99999974E-6 : f32
    %32 = vector.broadcast %cst_16 : f32 to vector<1x128xf32>
    %33 = arith.addf %30, %32 : vector<1x128xf32>
    %34 = math.rsqrt %33 : vector<1x128xf32>
    %35 = arith.mulf %31, %34 : vector<1x128xf32>
    %c0_17 = arith.constant 0 : index
    %c0_18 = arith.constant 0 : index
    %36 = vector.load %arg6[%c0_17, %c0_18] : memref<1x128xf32, #tpu.memory_space<vmem>>, vector<1x128xf32>
    %37 = arith.mulf %24, %35 : vector<1x128xf32>
    %38 = arith.subf %36, %37 : vector<1x128xf32>
    %39 = vector.broadcast %35 : vector<1x128xf32> to vector<8x128xf32>
    %40 = arith.mulf %13, %39 : vector<8x128xf32>
    %41 = vector.broadcast %38 : vector<1x128xf32> to vector<8x128xf32>
    %42 = arith.addf %40, %41 : vector<8x128xf32>
    %c0_19 = arith.constant 0 : index
    %c0_20 = arith.constant 0 : index
    %43 = vector.load %arg7[%c0_19, %c0_20] : memref<128x256xf32, #tpu.memory_space<vmem>>, vector<128x256xf32>
    %cst_21 = arith.constant dense<0.000000e+00> : vector<8x256xf32>
    %44 = tpu.matmul %42, %43, %cst_21 {dimension_numbers = #tpu.dot_dimension_numbers<[1], [0], [0], [1], [0, 0, 1, 1], [], []>} : vector<8x128xf32>, vector<128x256xf32>, vector<8x256xf32> -> vector<8x256xf32>
    %c0_22 = arith.constant 0 : index
    %c0_23 = arith.constant 0 : index
    %45 = vector.load %arg8[%c0_22, %c0_23] : memref<1x256xf32, #tpu.memory_space<vmem>>, vector<1x256xf32>
    %46 = vector.broadcast %45 : vector<1x256xf32> to vector<8x256xf32>
    %47 = arith.addf %44, %46 : vector<8x256xf32>
    %cst_24 = arith.constant 0.00999999977 : f32
    %48 = vector.broadcast %cst_24 : f32 to vector<8x256xf32>
    %49 = arith.mulf %48, %47 : vector<8x256xf32>
    %50 = arith.maximumf %47, %49 : vector<8x256xf32>
    %cst_25 = arith.constant 0.000000e+00 : f32
    %51 = vector.shape_cast %5 : vector<8x1xi1> to vector<8x1xi1>
    %52 = vector.broadcast %51 : vector<8x1xi1> to vector<8x256xi1>
    %53 = vector.broadcast %cst_25 : f32 to vector<8x256xf32>
    %54 = arith.select %52, %50, %53 : vector<8x256xi1>, vector<8x256xf32>
    %cst_26 = arith.constant dense<0.000000e+00> : vector<256xf32>
    %55 = vector.multi_reduction <add>, %54, %cst_26 [0] : vector<8x256xf32> to vector<256xf32>
    %56 = vector.shape_cast %55 : vector<256xf32> to vector<1x256xf32>
    %57 = arith.mulf %54, %54 : vector<8x256xf32>
    %cst_27 = arith.constant dense<0.000000e+00> : vector<256xf32>
    %58 = vector.multi_reduction <add>, %57, %cst_27 [0] : vector<8x256xf32> to vector<256xf32>
    %59 = vector.shape_cast %58 : vector<256xf32> to vector<1x256xf32>
    %60 = vector.broadcast %2 : f32 to vector<1x256xf32>
    %61 = arith.mulf %56, %60 : vector<1x256xf32>
    %62 = vector.broadcast %2 : f32 to vector<1x256xf32>
    %63 = arith.mulf %59, %62 : vector<1x256xf32>
    %64 = arith.mulf %61, %61 : vector<1x256xf32>
    %65 = arith.subf %63, %64 : vector<1x256xf32>
    %cst_28 = arith.constant 0.000000e+00 : f32
    %66 = vector.broadcast %cst_28 : f32 to vector<1x256xf32>
    %67 = arith.maximumf %65, %66 : vector<1x256xf32>
    %c0_29 = arith.constant 0 : index
    %c0_30 = arith.constant 0 : index
    %68 = vector.load %arg9[%c0_29, %c0_30] : memref<1x256xf32, #tpu.memory_space<vmem>>, vector<1x256xf32>
    %cst_31 = arith.constant 9.99999974E-6 : f32
    %69 = vector.broadcast %cst_31 : f32 to vector<1x256xf32>
    %70 = arith.addf %67, %69 : vector<1x256xf32>
    %71 = math.rsqrt %70 : vector<1x256xf32>
    %72 = arith.mulf %68, %71 : vector<1x256xf32>
    %c0_32 = arith.constant 0 : index
    %c0_33 = arith.constant 0 : index
    %73 = vector.load %arg10[%c0_32, %c0_33] : memref<1x256xf32, #tpu.memory_space<vmem>>, vector<1x256xf32>
    %74 = arith.mulf %61, %72 : vector<1x256xf32>
    %75 = arith.subf %73, %74 : vector<1x256xf32>
    %76 = vector.broadcast %72 : vector<1x256xf32> to vector<8x256xf32>
    %77 = arith.mulf %50, %76 : vector<8x256xf32>
    %78 = vector.broadcast %75 : vector<1x256xf32> to vector<8x256xf32>
    %79 = arith.addf %77, %78 : vector<8x256xf32>
    %c0_34 = arith.constant 0 : index
    %c0_35 = arith.constant 0 : index
    %80 = vector.load %arg11[%c0_34, %c0_35] : memref<256x256xf32, #tpu.memory_space<vmem>>, vector<256x256xf32>
    %cst_36 = arith.constant dense<0.000000e+00> : vector<8x256xf32>
    %81 = tpu.matmul %79, %80, %cst_36 {dimension_numbers = #tpu.dot_dimension_numbers<[1], [0], [0], [1], [0, 0, 1, 1], [], []>} : vector<8x256xf32>, vector<256x256xf32>, vector<8x256xf32> -> vector<8x256xf32>
    %c0_37 = arith.constant 0 : index
    %c0_38 = arith.constant 0 : index
    %82 = vector.load %arg12[%c0_37, %c0_38] : memref<1x256xf32, #tpu.memory_space<vmem>>, vector<1x256xf32>
    %83 = vector.broadcast %82 : vector<1x256xf32> to vector<8x256xf32>
    %84 = arith.addf %81, %83 : vector<8x256xf32>
    %cst_39 = arith.constant 0.00999999977 : f32
    %85 = vector.broadcast %cst_39 : f32 to vector<8x256xf32>
    %86 = arith.mulf %85, %84 : vector<8x256xf32>
    %87 = arith.maximumf %84, %86 : vector<8x256xf32>
    %c0_40 = arith.constant 0 : index
    %c0_41 = arith.constant 0 : index
    %88 = vector.load %arg13[%c0_40, %c0_41] : memref<256x128xf32, #tpu.memory_space<vmem>>, vector<256x128xf32>
    %cst_42 = arith.constant dense<0.000000e+00> : vector<8x128xf32>
    %89 = tpu.matmul %87, %88, %cst_42 {dimension_numbers = #tpu.dot_dimension_numbers<[1], [0], [0], [1], [0, 0, 1, 1], [], []>} : vector<8x256xf32>, vector<256x128xf32>, vector<8x128xf32> -> vector<8x128xf32>
    %c0_43 = arith.constant 0 : index
    %c0_44 = arith.constant 0 : index
    %90 = vector.load %arg14[%c0_43, %c0_44] : memref<1x128xf32, #tpu.memory_space<vmem>>, vector<1x128xf32>
    %91 = vector.broadcast %90 : vector<1x128xf32> to vector<8x128xf32>
    %92 = arith.addf %89, %91 : vector<8x128xf32>
    %c0_45 = arith.constant 0 : index
    %c0_46 = arith.constant 0 : index
    %93 = vector.load %arg15[%c0_45, %c0_46] : memref<8x128xf32, #tpu.memory_space<vmem>>, vector<8x128xf32>
    tpu.vector_store %arg15[%c0_45, %c0_46], %92 {strides = array<i32>} : memref<8x128xf32, #tpu.memory_space<vmem>>, vector<8x128xf32>,
    return
  }
}

</mosaic_0001>

<llo_original>
// kernel: tpu_custom_call.1
$region0: #{tpu_custom_call.1}
  #allocation0 [shape = 'u32[]', space=smem, size = 0x4, offset = 0x4, fixed_abs, tag = 'smem constant byte address 0x4 - core index']
  #allocation1 [shape = 'u32[144,128]{1,0:T(1,128)}', space=vmem, size = 0x12000, scoped, tag = 'internal scratch']
  #allocation2 [shape = 's32[1,1]{1,0:T(1,128)S(6)}', space=smem, size = 0x200, scoped, tag = 'scoped memory for tpu_custom_call.1']
  #allocation3 [shape = 'f32[1,1]{1,0:T(1,128)S(6)}', space=smem, size = 0x200, scoped, tag = 'scoped memory for tpu_custom_call.1']
  %s0 = inlined_call_operand.<no memory space> [shape: s32[1,1], index: 0, kind: input, shape index: {}]
  %s1 = inlined_call_operand.<no memory space> [shape: f32[1,1], index: 1, kind: input, shape index: {}]
  %s2 = inlined_call_operand.hbm [shape: f32[8,32], index: 2, kind: input, shape index: {}]
  %s3 = inlined_call_operand.hbm [shape: f32[32,128], index: 3, kind: input, shape index: {}]
  %s4 = inlined_call_operand.vmem [shape: f32[1,128], index: 4, kind: input, shape index: {}]
  %s5 = inlined_call_operand.vmem [shape: f32[1,128], index: 5, kind: input, shape index: {}]
  %s6 = inlined_call_operand.vmem [shape: f32[1,128], index: 6, kind: input, shape index: {}]
  %s7 = inlined_call_operand.hbm [shape: f32[128,256], index: 7, kind: input, shape index: {}]
  %s8 = inlined_call_operand.vmem [shape: f32[1,256], index: 8, kind: input, shape index: {}]
  %s9 = inlined_call_operand.vmem [shape: f32[1,256], index: 9, kind: input, shape index: {}]
  %s10 = inlined_call_operand.vmem [shape: f32[1,256], index: 10, kind: input, shape index: {}]
  %s11 = inlined_call_operand.hbm [shape: f32[256,256], index: 11, kind: input, shape index: {}]
  %s12 = inlined_call_operand.vmem [shape: f32[1,256], index: 12, kind: input, shape index: {}]
  %s13 = inlined_call_operand.hbm [shape: f32[256,128], index: 13, kind: input, shape index: {}]
  %s14 = inlined_call_operand.vmem [shape: f32[1,128], index: 14, kind: input, shape index: {}]
  %s15 = inlined_call_operand.hbm [shape: f32[8,128], index: 15, kind: output, shape index: {}]
  %s16 = sld [smem:[#allocation0]]
  $region90: #{tpu_custom_call.1} parent=0
    _
  %s18 = ssub.s32 1, %s16
  %s19 = scalar_select 0, %s18, %s16
  %20 = sst [smem:[#allocation2]] %s0
  %21 = sst [smem:[#allocation3]] %s1
  $region1: #{tpu_custom_call.1} parent=0
    #allocation4 [shape = 'u8[4096]{0}', space=vmem, size = 0x1000, scoped, tag = 'input window, operand 2, single buffered']
    #allocation5 [shape = 's32[1]{0}', space=sflag, size = 0x4, scoped, tag = 'scoped memory for tpu_custom_call.1']
    #allocation6 [shape = 's32[1]{0}', space=sflag, size = 0x4, scoped, tag = 'scoped memory for tpu_custom_call.1']
    #allocation7 [shape = 'u8[16384]{0}', space=vmem, size = 0x4000, scoped, tag = 'input window, operand 3, single buffered']
    #allocation8 [shape = 's32[1]{0}', space=sflag, size = 0x4, scoped, tag = 'scoped memory for tpu_custom_call.1']
    #allocation9 [shape = 'u8[131072]{0}', space=vmem, size = 0x20000, scoped, tag = 'input window, operand 7, single buffered']
    #allocation10 [shape = 'u8[262144]{0}', space=vmem, size = 0x40000, scoped, tag = 'input window, operand 11, single buffered']
    #allocation11 [shape = 's32[1]{0}', space=sflag, size = 0x4, scoped, tag = 'scoped memory for tpu_custom_call.1']
    #allocation12 [shape = 'u8[131072]{0}', space=vmem, size = 0x20000, scoped, tag = 'input window, operand 13, single buffered']
    #allocation13 [shape = 'u8[4096]{0}', space=vmem, size = 0x1000, scoped, tag = 'output window, operand 0, single buffered']
    %22 = vsyncpa [#allocation5], 0
    %23 = vsyncpa [#allocation8], 0
    %24 = vsyncpa [#allocation11], 0
    %25 = vsyncpa [#allocation6], 0
    // Predicated region
    $region2: #{tpu_custom_call.1} parent=1 // pred_check
      _
    $region3: #{tpu_custom_call.1} parent=1 // pred_check_branch
      %27 = sbr.rel (0) target = $region5
    $region4: #{tpu_custom_call.1} parent=1 // pred_region
      _
    $region5: #{tpu_custom_call.1} parent=1 // pred_fallthru
      _
    // Predicated region
    $region6: #{tpu_custom_call.1} parent=1 // pred_check
      _
    $region7: #{tpu_custom_call.1} parent=1 // pred_check_branch
      %29 = sbr.rel (0) target = $region9
    $region8: #{tpu_custom_call.1} parent=1 // pred_region
      _
    $region9: #{tpu_custom_call.1} parent=1 // pred_fallthru
      _
    // Predicated region
    $region10: #{tpu_custom_call.1} parent=1 // pred_check
      _
    $region11: #{tpu_custom_call.1} parent=1 // pred_check_branch
      %31 = sbr.rel (0) target = $region13
    $region12: #{tpu_custom_call.1} parent=1 // pred_region
      %s33 = ssub.s32 128, 128
      %34 = vsyncadd [#allocation5], %s33
      %s36 = sshll.u32 [#allocation4], 4
      %s37 = int_to_ptr.vmem [resolvable:$true] %s36
      %39 = dma.hbm_to_vmem [thread:$0]  %s2, 128, %s37, [#allocation5]
    $region13: #{tpu_custom_call.1} parent=1 // pred_fallthru
      _
    // Predicated region
    $region14: #{tpu_custom_call.1} parent=1 // pred_check
      _
    $region15: #{tpu_custom_call.1} parent=1 // pred_check_branch
      %41 = sbr.rel (0) target = $region17
    $region16: #{tpu_custom_call.1} parent=1 // pred_region
      %s43 = ssub.s32 512, 512
      %44 = vsyncadd [#allocation8], %s43
      %s45 = sshll.u32 [#allocation7], 4
      %s46 = int_to_ptr.vmem [resolvable:$true] %s45
      %51 = dma.hbm_to_vmem [thread:$0]  %s3, 512, %s46, [#allocation8], 128, 128, 8
    $region17: #{tpu_custom_call.1} parent=1 // pred_fallthru
      _
    // Predicated region
    $region18: #{tpu_custom_call.1} parent=1 // pred_check
      _
    $region19: #{tpu_custom_call.1} parent=1 // pred_check_branch
      %53 = sbr.rel (0) target = $region21
    $region20: #{tpu_custom_call.1} parent=1 // pred_region
      _
    $region21: #{tpu_custom_call.1} parent=1 // pred_fallthru
      _
    // Predicated region
    $region22: #{tpu_custom_call.1} parent=1 // pred_check
      _
    $region23: #{tpu_custom_call.1} parent=1 // pred_check_branch
      %55 = sbr.rel (0) target = $region25
    $region24: #{tpu_custom_call.1} parent=1 // pred_region
      _
    $region25: #{tpu_custom_call.1} parent=1 // pred_fallthru
      _
    // Predicated region
    $region26: #{tpu_custom_call.1} parent=1 // pred_check
      _
    $region27: #{tpu_custom_call.1} parent=1 // pred_check_branch
      %57 = sbr.rel (0) target = $region29
    $region28: #{tpu_custom_call.1} parent=1 // pred_region
      _
    $region29: #{tpu_custom_call.1} parent=1 // pred_fallthru
      _
    // Predicated region
    $region30: #{tpu_custom_call.1} parent=1 // pred_check
      _
    $region31: #{tpu_custom_call.1} parent=1 // pred_check_branch
      %59 = sbr.rel (0) target = $region33
    $region32: #{tpu_custom_call.1} parent=1 // pred_region
      %s61 = ssub.s32 4096, 4096
      %62 = vsyncadd [#allocation8], %s61
      %s63 = sshll.u32 [#allocation9], 4
      %s64 = int_to_ptr.vmem [resolvable:$true] %s63
      %69 = dma.hbm_to_vmem [thread:$0]  %s7, 4096, %s64, [#allocation8], 256, 256, 16
    $region33: #{tpu_custom_call.1} parent=1 // pred_fallthru
      _
    // Predicated region
    $region34: #{tpu_custom_call.1} parent=1 // pred_check
      _
    $region35: #{tpu_custom_call.1} parent=1 // pred_check_branch
      %71 = sbr.rel (0) target = $region37
    $region36: #{tpu_custom_call.1} parent=1 // pred_region
      _
    $region37: #{tpu_custom_call.1} parent=1 // pred_fallthru
      _
    // Predicated region
    $region38: #{tpu_custom_call.1} parent=1 // pred_check
      _
    $region39: #{tpu_custom_call.1} parent=1 // pred_check_branch
      %73 = sbr.rel (0) target = $region41
    $region40: #{tpu_custom_call.1} parent=1 // pred_region
      _
    $region41: #{tpu_custom_call.1} parent=1 // pred_fallthru
      _
    // Predicated region
    $region42: #{tpu_custom_call.1} parent=1 // pred_check
      _
    $region43: #{tpu_custom_call.1} parent=1 // pred_check_branch
      %75 = sbr.rel (0) target = $region45
    $region44: #{tpu_custom_call.1} parent=1 // pred_region
      _
    $region45: #{tpu_custom_call.1} parent=1 // pred_fallthru
      _
    // Predicated region
    $region46: #{tpu_custom_call.1} parent=1 // pred_check
      _
    $region47: #{tpu_custom_call.1} parent=1 // pred_check_branch
      %77 = sbr.rel (0) target = $region49
    $region48: #{tpu_custom_call.1} parent=1 // pred_region
      %s79 = ssub.s32 8192, 8192
      %80 = vsyncadd [#allocation11], %s79
      %s81 = sshll.u32 [#allocation10], 4
      %s82 = int_to_ptr.vmem [resolvable:$true] %s81
      %87 = dma.hbm_to_vmem [thread:$0]  %s11, 8192, %s82, [#allocation11], 256, 256, 16
    $region49: #{tpu_custom_call.1} parent=1 // pred_fallthru
      _
    // Predicated region
    $region50: #{tpu_custom_call.1} parent=1 // pred_check
      _
    $region51: #{tpu_custom_call.1} parent=1 // pred_check_branch
      %89 = sbr.rel (0) target = $region53
    $region52: #{tpu_custom_call.1} parent=1 // pred_region
      _
    $region53: #{tpu_custom_call.1} parent=1 // pred_fallthru
      _
    // Predicated region
    $region54: #{tpu_custom_call.1} parent=1 // pred_check
      _
    $region55: #{tpu_custom_call.1} parent=1 // pred_check_branch
      %91 = sbr.rel (0) target = $region57
    $region56: #{tpu_custom_call.1} parent=1 // pred_region
      %s93 = ssub.s32 4096, 4096
      %94 = vsyncadd [#allocation11], %s93
      %s95 = sshll.u32 [#allocation12], 4
      %s96 = int_to_ptr.vmem [resolvable:$true] %s95
      %101 = dma.hbm_to_vmem [thread:$0]  %s13, 4096, %s96, [#allocation11], 128, 128, 8
    $region57: #{tpu_custom_call.1} parent=1 // pred_fallthru
      _
    // Predicated region
    $region58: #{tpu_custom_call.1} parent=1 // pred_check
      _
    $region59: #{tpu_custom_call.1} parent=1 // pred_check_branch
      %103 = sbr.rel (0) target = $region61
    $region60: #{tpu_custom_call.1} parent=1 // pred_region
      _
    $region61: #{tpu_custom_call.1} parent=1 // pred_fallthru
      _
    // Predicated region
    $region62: #{tpu_custom_call.1} parent=1 // pred_check
      _
    $region63: #{tpu_custom_call.1} parent=1 // pred_check_branch
      %105 = sbr.rel (0) target = $region65
    $region64: #{tpu_custom_call.1} parent=1 // pred_region
      %106 = dma.done [#allocation5], 128
    $region65: #{tpu_custom_call.1} parent=1 // pred_fallthru
      _
    // Predicated region
    $region66: #{tpu_custom_call.1} parent=1 // pred_check
      _
    $region67: #{tpu_custom_call.1} parent=1 // pred_check_branch
      %108 = sbr.rel (0) target = $region69
    $region68: #{tpu_custom_call.1} parent=1 // pred_region
      %109 = dma.done [#allocation8], 512
    $region69: #{tpu_custom_call.1} parent=1 // pred_fallthru
      _
    // Predicated region
    $region70: #{tpu_custom_call.1} parent=1 // pred_check
      _
    $region71: #{tpu_custom_call.1} parent=1 // pred_check_branch
      %111 = sbr.rel (0) target = $region73
    $region72: #{tpu_custom_call.1} parent=1 // pred_region
      %112 = dma.done [#allocation8], 4096
    $region73: #{tpu_custom_call.1} parent=1 // pred_fallthru
      _
    // Predicated region
    $region74: #{tpu_custom_call.1} parent=1 // pred_check
      _
    $region75: #{tpu_custom_call.1} parent=1 // pred_check_branch
      %114 = sbr.rel (0) target = $region77
    $region76: #{tpu_custom_call.1} parent=1 // pred_region
      %115 = dma.done [#allocation11], 8192
    $region77: #{tpu_custom_call.1} parent=1 // pred_fallthru
      _
    // Predicated region
    $region78: #{tpu_custom_call.1} parent=1 // pred_check
      _
    $region79: #{tpu_custom_call.1} parent=1 // pred_check_branch
      %117 = sbr.rel (0) target = $region81
    $region80: #{tpu_custom_call.1} parent=1 // pred_region
      %118 = dma.done [#allocation11], 4096
    $region81: #{tpu_custom_call.1} parent=1 // pred_fallthru
      _
    %v119 = vld [vmem:[#allocation4] sm:$0xff]
    %s120 = sld [smem:[#allocation2]]
    %s121 = sld [smem:[#allocation3]]
    %v122 = vlaneseq
    %v123 = vshrl.u32 %v122, 7
    %v124 = vstv %s120
    %vm125 = vcmp.lt.s32.totalorder %v123, %v124
    %v126 = vld [vmem:[#allocation7] sm:$0xff]
    %v127 = vld [vmem:[#allocation7 + $0x8] sm:$0xff]
    %v128 = vld [vmem:[#allocation7 + $0x10] sm:$0xff]
    %v129 = vld [vmem:[#allocation7 + $0x18] sm:$0xff]
    %v130 = vld [vmem:[%s4] sm:$0x1]
    %v132 = vlaneseq
    %v133 = vshrl.u32 %v132, 7
    %v134 = vsub.s32 0, %v133
    %v135 = vrot.slane %v130, %v134
    %vm137 = vcmask 261120
    %v139 = vsel %vm137, %v119, 0
    %141 = vmatprep.subr.mxu0 0.0
    %142 = vmatpush1.msra.mxu0 %v126
    %143 = vmatprep.subr.mxu0 0.0
    %144 = vmatpush1.msra.mxu0 %v127
    %145 = vmatprep.subr.mxu0 0.0
    %146 = vmatpush1.msra.mxu0 %v128
    %147 = vmatprep.subr.mxu0 0.0
    %148 = vmatpush1.msra.mxu0 %v129
    %149 = vmatprep.subr.mxu0 0.0
    %150 = vmatpush1.msra.mxu0 0.0
    %151 = vmatprep.subr.mxu0 0.0
    %152 = vmatpush1.msra.mxu0 0.0
    %153 = vmatprep.subr.mxu0 0.0
    %154 = vmatpush1.msra.mxu0 0.0
    %155 = vmatprep.subr.mxu0 0.0
    %156 = vmatpush1.msra.mxu0 0.0
    %157 = vmatprep.subr.mxu0 0.0
    %158 = vmatpush1.msra.mxu0 0.0
    %159 = vmatprep.subr.mxu0 0.0
    %160 = vmatpush1.msra.mxu0 0.0
    %161 = vmatprep.subr.mxu0 0.0
    %162 = vmatpush1.msra.mxu0 0.0
    %163 = vmatprep.subr.mxu0 0.0
    %164 = vmatpush1.msra.mxu0 0.0
    %165 = vmatprep.subr.mxu0 0.0
    %166 = vmatpush1.msra.mxu0 0.0
    %167 = vmatprep.subr.mxu0 0.0
    %168 = vmatpush1.msra.mxu0 0.0
    %169 = vmatprep.subr.mxu0 0.0
    %170 = vmatpush1.msra.mxu0 0.0
    %171 = vmatprep.subr.mxu0 0.0
    %172 = vmatpush1.msra.mxu0 0.0
    %173 = vmatprep.subr.mxu0 0.0
    %174 = vmatpush1.msra.mxu0 0.0
    %175 = vmatprep.subr.mxu0 0.0
    %176 = vmatpush1.msra.mxu0 0.0
    %177 = vmatprep.subr.mxu0 0.0
    %178 = vmatpush1.msra.mxu0 0.0
    %179 = vmatprep.subr.mxu0 0.0
    %180 = vmatpush1.msra.mxu0 0.0
    %181 = vmatprep.subr.mxu0 0.0
    %182 = vmatpush1.msra.mxu0 0.0
    %183 = vmatprep.subr.mxu0 0.0
    %184 = vmatpush1.msra.mxu0 0.0
    %185 = vmatprep.subr.mxu0 0.0
    %186 = vmatpush1.msra.mxu0 0.0
    %187 = vmatprep.subr.mxu0 0.0
    %188 = vmatpush1.msra.mxu0 0.0
    %189 = vmatprep.subr.mxu0 0.0
    %190 = vmatpush1.msra.mxu0 0.0
    %191 = vmatprep.subr.mxu0 0.0
    %192 = vmatpush1.msra.mxu0 0.0
    %193 = vmatprep.subr.mxu0 0.0
    %194 = vmatpush1.msra.mxu0 0.0
    %195 = vmatprep.subr.mxu0 0.0
    %196 = vmatpush1.msra.mxu0 0.0
    %197 = vmatprep.subr.mxu0 0.0
    %198 = vmatpush1.msra.mxu0 0.0
    %199 = vmatprep.subr.mxu0 0.0
    %200 = vmatpush1.msra.mxu0 0.0
    %201 = vmatprep.subr.mxu0 0.0
    %202 = vmatpush1.msra.mxu0 0.0
    %203 = vmatprep.subr.mxu0 0.0
    %204 = vmatpush1.msra.mxu0 0.0
    %205 = vmatprep.mubr.f32.mxu0 0.0
    %206 = vmatmul.mubr.f32.gmra.mrb[0].mxu0 %v139
    %v207 = vpop.f32.mrb[0].mxu0
    %v208 = vadd.f32 %v135, %v207
    %v209 = vpop.f32.mrb[0].mxu0
    %210 = vdwg.mxu0
    %v211 = vmul.f32 %v208, 0.01
    %v212 = vmax.f32 %v208, %v211
    %v213 = vsel %vm125, 1, 0
    %vm214 = vcmp.eq.s32.totalorder %v213, 1
    %v215 = vsel %vm214, %v212, 0.0
    %v216 = vrot.slane %v215, 4
    %v217 = vadd.f32 %v215, %v216
    %v218 = vrot.slane %v217, 2
    %v219 = vadd.f32 %v217, %v218
    %v220 = vrot.slane %v219, 1
    %v221 = vadd.f32 %v219, %v220
    %v222 = vmul.f32 %v215, %v215
    %v223 = vrot.slane %v222, 4
    %v224 = vadd.f32 %v222, %v223
    %v225 = vrot.slane %v224, 2
    %v226 = vadd.f32 %v224, %v225
    %v227 = vrot.slane %v226, 1
    %v228 = vadd.f32 %v226, %v227
    %v229 = vstv %s121
    %v230 = vmul.f32 %v221, %v229
    %v231 = vmul.f32 %v228, %v229
    %v232 = vmul.f32 %v230, %v230
    %v233 = vsub.f32 %v231, %v232
    %v234 = vmax.f32 %v233, 0.0
    %v235 = vld [vmem:[%s5] sm:$0x1]
    %v236 = vadd.f32 %v234, 1e-05
    %v237 = vrsqrt.pop %v236
    %v238 = vmul.f32 %v235, %v237
    %v239 = vld [vmem:[%s6] sm:$0x1]
    %v240 = vmul.f32 %v230, %v238
    %v241 = vsub.f32 %v239, %v240
    %v243 = vlaneseq
    %v244 = vshrl.u32 %v243, 7
    %v245 = vsub.s32 0, %v244
    %v246 = vrot.slane %v238, %v245
    %v248 = vmul.f32 %v212, %v246
    %v250 = vlaneseq
    %v251 = vshrl.u32 %v250, 7
    %v252 = vsub.s32 0, %v251
    %v253 = vrot.slane %v241, %v252
    %v255 = vadd.f32 %v248, %v253
    %v256 = vld [vmem:[#allocation9] sm:$0xff]
    %v257 = vld [vmem:[#allocation9 + $0x8] sm:$0xff]
    %v258 = vld [vmem:[#allocation9 + $0x10] sm:$0xff]
    %v259 = vld [vmem:[#allocation9 + $0x18] sm:$0xff]
    %v260 = vld [vmem:[#allocation9 + $0x20] sm:$0xff]
    %v261 = vld [vmem:[#allocation9 + $0x28] sm:$0xff]
    %v262 = vld [vmem:[#allocation9 + $0x30] sm:$0xff]
    %v263 = vld [vmem:[#allocation9 + $0x38] sm:$0xff]
    %v264 = vld [vmem:[#allocation9 + $0x40] sm:$0xff]
    %v265 = vld [vmem:[#allocation9 + $0x48] sm:$0xff]
    %v266 = vld [vmem:[#allocation9 + $0x50] sm:$0xff]
    %v267 = vld [vmem:[#allocation9 + $0x58] sm:$0xff]
    %v268 = vld [vmem:[#allocation9 + $0x60] sm:$0xff]
    %v269 = vld [vmem:[#allocation9 + $0x68] sm:$0xff]
    %v270 = vld [vmem:[#allocation9 + $0x70] sm:$0xff]
    %v271 = vld [vmem:[#allocation9 + $0x78] sm:$0xff]
    %v272 = vld [vmem:[#allocation9 + $0x80] sm:$0xff]
    %v273 = vld [vmem:[#allocation9 + $0x88] sm:$0xff]
    %v274 = vld [vmem:[#allocation9 + $0x90] sm:$0xff]
    %v275 = vld [vmem:[#allocation9 + $0x98] sm:$0xff]
    %v276 = vld [vmem:[#allocation9 + $0xa0] sm:$0xff]
    %v277 = vld [vmem:[#allocation9 + $0xa8] sm:$0xff]
    %v278 = vld [vmem:[#allocation9 + $0xb0] sm:$0xff]
    %v279 = vld [vmem:[#allocation9 + $0xb8] sm:$0xff]
    %v280 = vld [vmem:[#allocation9 + $0xc0] sm:$0xff]
    %v281 = vld [vmem:[#allocation9 + $0xc8] sm:$0xff]
    %v282 = vld [vmem:[#allocation9 + $0xd0] sm:$0xff]
    %v283 = vld [vmem:[#allocation9 + $0xd8] sm:$0xff]
    %v284 = vld [vmem:[#allocation9 + $0xe0] sm:$0xff]
    %v285 = vld [vmem:[#allocation9 + $0xe8] sm:$0xff]
    %v286 = vld [vmem:[#allocation9 + $0xf0] sm:$0xff]
    %v287 = vld [vmem:[#allocation9 + $0xf8] sm:$0xff]
    %v288 = vld [vmem:[%s8] sm:$0x3]
    %v290 = vlaneseq
    %v291 = vshrl.u32 %v290, 7
    %v292 = vsub.s32 0, %v291
    %v293 = vrot.slane %v288, %v292
    %v294 = vlaneseq
    %v295 = vshrl.u32 %v294, 7
    %v296 = vsub.s32 1, %v295
    %v297 = vrot.slane %v288, %v296
    %300 = vmatprep.subr.mxu0 %v257
    %301 = vmatpush1.msra.mxu0 %v256
    %302 = vmatprep.subr.mxu0 %v259
    %303 = vmatpush1.msra.mxu0 %v258
    %304 = vmatprep.subr.mxu0 %v261
    %305 = vmatpush1.msra.mxu0 %v260
    %306 = vmatprep.subr.mxu0 %v263
    %307 = vmatpush1.msra.mxu0 %v262
    %308 = vmatprep.subr.mxu0 %v265
    %309 = vmatpush1.msra.mxu0 %v264
    %310 = vmatprep.subr.mxu0 %v267
    %311 = vmatpush1.msra.mxu0 %v266
    %312 = vmatprep.subr.mxu0 %v269
    %313 = vmatpush1.msra.mxu0 %v268
    %314 = vmatprep.subr.mxu0 %v271
    %315 = vmatpush1.msra.mxu0 %v270
    %316 = vmatprep.subr.mxu0 %v273
    %317 = vmatpush1.msra.mxu0 %v272
    %318 = vmatprep.subr.mxu0 %v275
    %319 = vmatpush1.msra.mxu0 %v274
    %320 = vmatprep.subr.mxu0 %v277
    %321 = vmatpush1.msra.mxu0 %v276
    %322 = vmatprep.subr.mxu0 %v279
    %323 = vmatpush1.msra.mxu0 %v278
    %324 = vmatprep.subr.mxu0 %v281
    %325 = vmatpush1.msra.mxu0 %v280
    %326 = vmatprep.subr.mxu0 %v283
    %327 = vmatpush1.msra.mxu0 %v282
    %328 = vmatprep.subr.mxu0 %v285
    %329 = vmatpush1.msra.mxu0 %v284
    %330 = vmatprep.subr.mxu0 %v287
    %331 = vmatpush1.msra.mxu0 %v286
    %332 = vmatprep.subr.mxu0 0.0
    %333 = vmatpush1.msra.mxu0 0.0
    %334 = vmatprep.subr.mxu0 0.0
    %335 = vmatpush1.msra.mxu0 0.0
    %336 = vmatprep.subr.mxu0 0.0
    %337 = vmatpush1.msra.mxu0 0.0
    %338 = vmatprep.subr.mxu0 0.0
    %339 = vmatpush1.msra.mxu0 0.0
    %340 = vmatprep.subr.mxu0 0.0
    %341 = vmatpush1.msra.mxu0 0.0
    %342 = vmatprep.subr.mxu0 0.0
    %343 = vmatpush1.msra.mxu0 0.0
    %344 = vmatprep.subr.mxu0 0.0
    %345 = vmatpush1.msra.mxu0 0.0
    %346 = vmatprep.subr.mxu0 0.0
    %347 = vmatpush1.msra.mxu0 0.0
    %348 = vmatprep.subr.mxu0 0.0
    %349 = vmatpush1.msra.mxu0 0.0
    %350 = vmatprep.subr.mxu0 0.0
    %351 = vmatpush1.msra.mxu0 0.0
    %352 = vmatprep.subr.mxu0 0.0
    %353 = vmatpush1.msra.mxu0 0.0
    %354 = vmatprep.subr.mxu0 0.0
    %355 = vmatpush1.msra.mxu0 0.0
    %356 = vmatprep.subr.mxu0 0.0
    %357 = vmatpush1.msra.mxu0 0.0
    %358 = vmatprep.subr.mxu0 0.0
    %359 = vmatpush1.msra.mxu0 0.0
    %360 = vmatprep.subr.mxu0 0.0
    %361 = vmatpush1.msra.mxu0 0.0
    %362 = vmatprep.subr.mxu0 0.0
    %363 = vmatpush1.msra.mxu0 0.0
    %364 = vmatprep.mubr.f32.mxu0 0.0
    %365 = vmatmul.mubr.f32.gmra.mrb[0].mxu0 %v255
    %v366 = vpop.f32.mrb[0].mxu0
    %v367 = vadd.f32 %v293, %v366
    %v368 = vpop.f32.mrb[0].mxu0
    %v369 = vadd.f32 %v297, %v368
    %370 = vdwg.mxu0
    %v371 = vmul.f32 %v367, 0.01
    %v372 = vmul.f32 %v369, 0.01
    %v373 = vmax.f32 %v367, %v371
    %v374 = vmax.f32 %v369, %v372
    %v375 = vsel %vm214, %v373, 0.0
    %v376 = vsel %vm214, %v374, 0.0
    %v377 = vrot.slane %v375, 4
    %v378 = vadd.f32 %v375, %v377
    %v379 = vrot.slane %v378, 2
    %v380 = vadd.f32 %v378, %v379
    %v381 = vrot.slane %v380, 1
    %v382 = vadd.f32 %v380, %v381
    %v383 = vrot.slane %v376, 4
    %v384 = vadd.f32 %v376, %v383
    %v385 = vrot.slane %v384, 2
    %v386 = vadd.f32 %v384, %v385
    %v387 = vrot.slane %v386, 1
    %v388 = vadd.f32 %v386, %v387
    %v389 = vmul.f32 %v375, %v375
    %v390 = vmul.f32 %v376, %v376
    %v391 = vrot.slane %v389, 4
    %v392 = vadd.f32 %v389, %v391
    %v393 = vrot.slane %v392, 2
    %v394 = vadd.f32 %v392, %v393
    %v395 = vrot.slane %v394, 1
    %v396 = vadd.f32 %v394, %v395
    %v397 = vrot.slane %v390, 4
    %v398 = vadd.f32 %v390, %v397
    %v399 = vrot.slane %v398, 2
    %v400 = vadd.f32 %v398, %v399
    %v401 = vrot.slane %v400, 1
    %v402 = vadd.f32 %v400, %v401
    %v403 = vmul.f32 %v382, %v229
    %v404 = vmul.f32 %v388, %v229
    %v405 = vmul.f32 %v396, %v229
    %v406 = vmul.f32 %v402, %v229
    %v407 = vmul.f32 %v403, %v403
    %v408 = vmul.f32 %v404, %v404
    %v409 = vsub.f32 %v405, %v407
    %v410 = vsub.f32 %v406, %v408
    %v411 = vmax.f32 %v409, 0.0
    %v412 = vmax.f32 %v410, 0.0
    %v413 = vld [vmem:[%s9] sm:$0x3]
    %v414 = vadd.f32 %v411, 1e-05
    %v415 = vadd.f32 %v412, 1e-05
    %v416 = vrsqrt.pop %v414
    %v417 = vrsqrt.pop %v415
    %v420 = vcombine.low %v416, %v417
    %v422 = vunpack.c.l.s4 1966171168
    %v423 = vunpack.c.0.s8 %v422
    %v424 = vlaneseq
    %v425 = vshrl.u32 %v424, 7
    %v426 = vsub.s32 %v423, %v425
    %v427 = vrot.slane %v420, %v426
    %v429 = vunpack.c.l.s4 1966171168
    %v430 = vunpack.c.0.s8 %v429
    %v431 = vlaneseq
    %v432 = vshrl.u32 %v431, 7
    %v433 = vsub.s32 %v430, %v432
    %v434 = vrot.slane %v427, %v433
    %v436 = vmul.f32 %v413, %v434
    %v437 = vld [vmem:[%s10] sm:$0x3]
    %v439 = vlaneseq
    %v440 = vshrl.u32 %v439, 7
    %v441 = vsub.s32 0, %v440
    %v442 = vrot.slane %v436, %v441
    %v443 = vlaneseq
    %v444 = vshrl.u32 %v443, 7
    %v445 = vsub.s32 1, %v444
    %v446 = vrot.slane %v436, %v445
    %v449 = vmul.f32 %v403, %v442
    %v450 = vmul.f32 %v404, %v446
    %v453 = vcombine.low %v449, %v450
    %v455 = vunpack.c.l.s4 1966171168
    %v456 = vunpack.c.0.s8 %v455
    %v457 = vlaneseq
    %v458 = vshrl.u32 %v457, 7
    %v459 = vsub.s32 %v456, %v458
    %v460 = vrot.slane %v453, %v459
    %v462 = vunpack.c.l.s4 1966171168
    %v463 = vunpack.c.0.s8 %v462
    %v464 = vlaneseq
    %v465 = vshrl.u32 %v464, 7
    %v466 = vsub.s32 %v463, %v465
    %v467 = vrot.slane %v460, %v466
    %v469 = vsub.f32 %v437, %v467
    %v470 = vmul.f32 %v373, %v442
    %v471 = vmul.f32 %v374, %v446
    %v473 = vlaneseq
    %v474 = vshrl.u32 %v473, 7
    %v475 = vsub.s32 0, %v474
    %v476 = vrot.slane %v469, %v475
    %v477 = vlaneseq
    %v478 = vshrl.u32 %v477, 7
    %v479 = vsub.s32 1, %v478
    %v480 = vrot.slane %v469, %v479
    %v483 = vadd.f32 %v470, %v476
    %v484 = vadd.f32 %v471, %v480
    %v485 = vld [vmem:[#allocation10] sm:$0xff]
    %v486 = vld [vmem:[#allocation10 + $0x8] sm:$0xff]
    %v487 = vld [vmem:[#allocation10 + $0x10] sm:$0xff]
    %v488 = vld [vmem:[#allocation10 + $0x18] sm:$0xff]
    %v489 = vld [vmem:[#allocation10 + $0x20] sm:$0xff]
    %v490 = vld [vmem:[#allocation10 + $0x28] sm:$0xff]
    %v491 = vld [vmem:[#allocation10 + $0x30] sm:$0xff]
    %v492 = vld [vmem:[#allocation10 + $0x38] sm:$0xff]
    %v493 = vld [vmem:[#allocation10 + $0x40] sm:$0xff]
    %v494 = vld [vmem:[#allocation10 + $0x48] sm:$0xff]
    %v495 = vld [vmem:[#allocation10 + $0x50] sm:$0xff]
    %v496 = vld [vmem:[#allocation10 + $0x58] sm:$0xff]
    %v497 = vld [vmem:[#allocation10 + $0x60] sm:$0xff]
    %v498 = vld [vmem:[#allocation10 + $0x68] sm:$0xff]
    %v499 = vld [vmem:[#allocation10 + $0x70] sm:$0xff]
    %v500 = vld [vmem:[#allocation10 + $0x78] sm:$0xff]
    %v501 = vld [vmem:[#allocation10 + $0x80] sm:$0xff]
    %v502 = vld [vmem:[#allocation10 + $0x88] sm:$0xff]
    %v503 = vld [vmem:[#allocation10 + $0x90] sm:$0xff]
    %v504 = vld [vmem:[#allocation10 + $0x98] sm:$0xff]
    %v505 = vld [vmem:[#allocation10 + $0xa0] sm:$0xff]
    %v506 = vld [vmem:[#allocation10 + $0xa8] sm:$0xff]
    %v507 = vld [vmem:[#allocation10 + $0xb0] sm:$0xff]
    %v508 = vld [vmem:[#allocation10 + $0xb8] sm:$0xff]
    %v509 = vld [vmem:[#allocation10 + $0xc0] sm:$0xff]
    %v510 = vld [vmem:[#allocation10 + $0xc8] sm:$0xff]
    %v511 = vld [vmem:[#allocation10 + $0xd0] sm:$0xff]
    %v512 = vld [vmem:[#allocation10 + $0xd8] sm:$0xff]
    %v513 = vld [vmem:[#allocation10 + $0xe0] sm:$0xff]
    %v514 = vld [vmem:[#allocation10 + $0xe8] sm:$0xff]
    %v515 = vld [vmem:[#allocation10 + $0xf0] sm:$0xff]
    %v516 = vld [vmem:[#allocation10 + $0xf8] sm:$0xff]
    %v517 = vld [vmem:[#allocation10 + $0x100] sm:$0xff]
    %v518 = vld [vmem:[#allocation10 + $0x108] sm:$0xff]
    %v519 = vld [vmem:[#allocation10 + $0x110] sm:$0xff]
    %v520 = vld [vmem:[#allocation10 + $0x118] sm:$0xff]
    %v521 = vld [vmem:[#allocation10 + $0x120] sm:$0xff]
    %v522 = vld [vmem:[#allocation10 + $0x128] sm:$0xff]
    %v523 = vld [vmem:[#allocation10 + $0x130] sm:$0xff]
    %v524 = vld [vmem:[#allocation10 + $0x138] sm:$0xff]
    %v525 = vld [vmem:[#allocation10 + $0x140] sm:$0xff]
    %v526 = vld [vmem:[#allocation10 + $0x148] sm:$0xff]
    %v527 = vld [vmem:[#allocation10 + $0x150] sm:$0xff]
    %v528 = vld [vmem:[#allocation10 + $0x158] sm:$0xff]
    %v529 = vld [vmem:[#allocation10 + $0x160] sm:$0xff]
    %v530 = vld [vmem:[#allocation10 + $0x168] sm:$0xff]
    %v531 = vld [vmem:[#allocation10 + $0x170] sm:$0xff]
    %v532 = vld [vmem:[#allocation10 + $0x178] sm:$0xff]
    %v533 = vld [vmem:[#allocation10 + $0x180] sm:$0xff]
    %v534 = vld [vmem:[#allocation10 + $0x188] sm:$0xff]
    %v535 = vld [vmem:[#allocation10 + $0x190] sm:$0xff]
    %v536 = vld [vmem:[#allocation10 + $0x198] sm:$0xff]
    %v537 = vld [vmem:[#allocation10 + $0x1a0] sm:$0xff]
    %v538 = vld [vmem:[#allocation10 + $0x1a8] sm:$0xff]
    %v539 = vld [vmem:[#allocation10 + $0x1b0] sm:$0xff]
    %v540 = vld [vmem:[#allocation10 + $0x1b8] sm:$0xff]
    %v541 = vld [vmem:[#allocation10 + $0x1c0] sm:$0xff]
    %v542 = vld [vmem:[#allocation10 + $0x1c8] sm:$0xff]
    %v543 = vld [vmem:[#allocation10 + $0x1d0] sm:$0xff]
    %v544 = vld [vmem:[#allocation10 + $0x1d8] sm:$0xff]
    %v545 = vld [vmem:[#allocation10 + $0x1e0] sm:$0xff]
    %v546 = vld [vmem:[#allocation10 + $0x1e8] sm:$0xff]
    %v547 = vld [vmem:[#allocation10 + $0x1f0] sm:$0xff]
    %v548 = vld [vmem:[#allocation10 + $0x1f8] sm:$0xff]
    %v549 = vld [vmem:[%s12] sm:$0x3]
    %v551 = vlaneseq
    %v552 = vshrl.u32 %v551, 7
    %v553 = vsub.s32 0, %v552
    %v554 = vrot.slane %v549, %v553
    %v555 = vlaneseq
    %v556 = vshrl.u32 %v555, 7
    %v557 = vsub.s32 1, %v556
    %v558 = vrot.slane %v549, %v557
    %561 = vmatprep.subr.mxu0 %v486
    %562 = vmatpush1.msra.mxu0 %v485
    %563 = vmatprep.subr.mxu0 %v488
    %564 = vmatpush1.msra.mxu0 %v487
    %565 = vmatprep.subr.mxu0 %v490
    %566 = vmatpush1.msra.mxu0 %v489
    %567 = vmatprep.subr.mxu0 %v492
    %568 = vmatpush1.msra.mxu0 %v491
    %569 = vmatprep.subr.mxu0 %v494
    %570 = vmatpush1.msra.mxu0 %v493
    %571 = vmatprep.subr.mxu0 %v496
    %572 = vmatpush1.msra.mxu0 %v495
    %573 = vmatprep.subr.mxu0 %v498
    %574 = vmatpush1.msra.mxu0 %v497
    %575 = vmatprep.subr.mxu0 %v500
    %576 = vmatpush1.msra.mxu0 %v499
    %577 = vmatprep.subr.mxu0 %v502
    %578 = vmatpush1.msra.mxu0 %v501
    %579 = vmatprep.subr.mxu0 %v504
    %580 = vmatpush1.msra.mxu0 %v503
    %581 = vmatprep.subr.mxu0 %v506
    %582 = vmatpush1.msra.mxu0 %v505
    %583 = vmatprep.subr.mxu0 %v508
    %584 = vmatpush1.msra.mxu0 %v507
    %585 = vmatprep.subr.mxu0 %v510
    %586 = vmatpush1.msra.mxu0 %v509
    %587 = vmatprep.subr.mxu0 %v512
    %588 = vmatpush1.msra.mxu0 %v511
    %589 = vmatprep.subr.mxu0 %v514
    %590 = vmatpush1.msra.mxu0 %v513
    %591 = vmatprep.subr.mxu0 %v516
    %592 = vmatpush1.msra.mxu0 %v515
    %593 = vmatprep.subr.mxu0 %v518
    %594 = vmatpush1.msra.mxu0 %v517
    %595 = vmatprep.subr.mxu0 %v520
    %596 = vmatpush1.msra.mxu0 %v519
    %597 = vmatprep.subr.mxu0 %v522
    %598 = vmatpush1.msra.mxu0 %v521
    %599 = vmatprep.subr.mxu0 %v524
    %600 = vmatpush1.msra.mxu0 %v523
    %601 = vmatprep.subr.mxu0 %v526
    %602 = vmatpush1.msra.mxu0 %v525
    %603 = vmatprep.subr.mxu0 %v528
    %604 = vmatpush1.msra.mxu0 %v527
    %605 = vmatprep.subr.mxu0 %v530
    %606 = vmatpush1.msra.mxu0 %v529
    %607 = vmatprep.subr.mxu0 %v532
    %608 = vmatpush1.msra.mxu0 %v531
    %609 = vmatprep.subr.mxu0 %v534
    %610 = vmatpush1.msra.mxu0 %v533
    %611 = vmatprep.subr.mxu0 %v536
    %612 = vmatpush1.msra.mxu0 %v535
    %613 = vmatprep.subr.mxu0 %v538
    %614 = vmatpush1.msra.mxu0 %v537
    %615 = vmatprep.subr.mxu0 %v540
    %616 = vmatpush1.msra.mxu0 %v539
    %617 = vmatprep.subr.mxu0 %v542
    %618 = vmatpush1.msra.mxu0 %v541
    %619 = vmatprep.subr.mxu0 %v544
    %620 = vmatpush1.msra.mxu0 %v543
    %621 = vmatprep.subr.mxu0 %v546
    %622 = vmatpush1.msra.mxu0 %v545
    %623 = vmatprep.subr.mxu0 %v548
    %624 = vmatpush1.msra.mxu0 %v547
    %625 = vmatprep.mubr.f32.mxu0 %v484
    %626 = vmatmul.mubr.f32.gmra.mrb[0].mxu0 %v483
    %v627 = vpop.f32.mrb[0].mxu0
    %v628 = vadd.f32 %v554, %v627
    %v629 = vpop.f32.mrb[0].mxu0
    %v630 = vadd.f32 %v558, %v629
    %631 = vdwg.mxu0
    %v632 = vmul.f32 %v628, 0.01
    %v633 = vmul.f32 %v630, 0.01
    %v634 = vmax.f32 %v628, %v632
    %v635 = vmax.f32 %v630, %v633
    %v636 = vld [vmem:[#allocation12] sm:$0xff]
    %v637 = vld [vmem:[#allocation12 + $0x8] sm:$0xff]
    %v638 = vld [vmem:[#allocation12 + $0x10] sm:$0xff]
    %v639 = vld [vmem:[#allocation12 + $0x18] sm:$0xff]
    %v640 = vld [vmem:[#allocation12 + $0x20] sm:$0xff]
    %v641 = vld [vmem:[#allocation12 + $0x28] sm:$0xff]
    %v642 = vld [vmem:[#allocation12 + $0x30] sm:$0xff]
    %v643 = vld [vmem:[#allocation12 + $0x38] sm:$0xff]
    %v644 = vld [vmem:[#allocation12 + $0x40] sm:$0xff]
    %v645 = vld [vmem:[#allocation12 + $0x48] sm:$0xff]
    %v646 = vld [vmem:[#allocation12 + $0x50] sm:$0xff]
    %v647 = vld [vmem:[#allocation12 + $0x58] sm:$0xff]
    %v648 = vld [vmem:[#allocation12 + $0x60] sm:$0xff]
    %v649 = vld [vmem:[#allocation12 + $0x68] sm:$0xff]
    %v650 = vld [vmem:[#allocation12 + $0x70] sm:$0xff]
    %v651 = vld [vmem:[#allocation12 + $0x78] sm:$0xff]
    %v652 = vld [vmem:[#allocation12 + $0x80] sm:$0xff]
    %v653 = vld [vmem:[#allocation12 + $0x88] sm:$0xff]
    %v654 = vld [vmem:[#allocation12 + $0x90] sm:$0xff]
    %v655 = vld [vmem:[#allocation12 + $0x98] sm:$0xff]
    %v656 = vld [vmem:[#allocation12 + $0xa0] sm:$0xff]
    %v657 = vld [vmem:[#allocation12 + $0xa8] sm:$0xff]
    %v658 = vld [vmem:[#allocation12 + $0xb0] sm:$0xff]
    %v659 = vld [vmem:[#allocation12 + $0xb8] sm:$0xff]
    %v660 = vld [vmem:[#allocation12 + $0xc0] sm:$0xff]
    %v661 = vld [vmem:[#allocation12 + $0xc8] sm:$0xff]
    %v662 = vld [vmem:[#allocation12 + $0xd0] sm:$0xff]
    %v663 = vld [vmem:[#allocation12 + $0xd8] sm:$0xff]
    %v664 = vld [vmem:[#allocation12 + $0xe0] sm:$0xff]
    %v665 = vld [vmem:[#allocation12 + $0xe8] sm:$0xff]
    %v666 = vld [vmem:[#allocation12 + $0xf0] sm:$0xff]
    %v667 = vld [vmem:[#allocation12 + $0xf8] sm:$0xff]
    %v668 = vld [vmem:[%s14] sm:$0x1]
    %v670 = vlaneseq
    %v671 = vshrl.u32 %v670, 7
    %v672 = vsub.s32 0, %v671
    %v673 = vrot.slane %v668, %v672
    %675 = vmatprep.subr.mxu0 0.0
    %676 = vmatpush1.msra.mxu0 %v636
    %677 = vmatprep.subr.mxu0 0.0
    %678 = vmatpush1.msra.mxu0 %v637
    %679 = vmatprep.subr.mxu0 0.0
    %680 = vmatpush1.msra.mxu0 %v638
    %681 = vmatprep.subr.mxu0 0.0
    %682 = vmatpush1.msra.mxu0 %v639
    %683 = vmatprep.subr.mxu0 0.0
    %684 = vmatpush1.msra.mxu0 %v640
    %685 = vmatprep.subr.mxu0 0.0
    %686 = vmatpush1.msra.mxu0 %v641
    %687 = vmatprep.subr.mxu0 0.0
    %688 = vmatpush1.msra.mxu0 %v642
    %689 = vmatprep.subr.mxu0 0.0
    %690 = vmatpush1.msra.mxu0 %v643
    %691 = vmatprep.subr.mxu0 0.0
    %692 = vmatpush1.msra.mxu0 %v644
    %693 = vmatprep.subr.mxu0 0.0
    %694 = vmatpush1.msra.mxu0 %v645
    %695 = vmatprep.subr.mxu0 0.0
    %696 = vmatpush1.msra.mxu0 %v646
    %697 = vmatprep.subr.mxu0 0.0
    %698 = vmatpush1.msra.mxu0 %v647
    %699 = vmatprep.subr.mxu0 0.0
    %700 = vmatpush1.msra.mxu0 %v648
    %701 = vmatprep.subr.mxu0 0.0
    %702 = vmatpush1.msra.mxu0 %v649
    %703 = vmatprep.subr.mxu0 0.0
    %704 = vmatpush1.msra.mxu0 %v650
    %705 = vmatprep.subr.mxu0 0.0
    %706 = vmatpush1.msra.mxu0 %v651
    %707 = vmatprep.subr.mxu0 0.0
    %708 = vmatpush1.msra.mxu0 %v652
    %709 = vmatprep.subr.mxu0 0.0
    %710 = vmatpush1.msra.mxu0 %v653
    %711 = vmatprep.subr.mxu0 0.0
    %712 = vmatpush1.msra.mxu0 %v654
    %713 = vmatprep.subr.mxu0 0.0
    %714 = vmatpush1.msra.mxu0 %v655
    %715 = vmatprep.subr.mxu0 0.0
    %716 = vmatpush1.msra.mxu0 %v656
    %717 = vmatprep.subr.mxu0 0.0
    %718 = vmatpush1.msra.mxu0 %v657
    %719 = vmatprep.subr.mxu0 0.0
    %720 = vmatpush1.msra.mxu0 %v658
    %721 = vmatprep.subr.mxu0 0.0
    %722 = vmatpush1.msra.mxu0 %v659
    %723 = vmatprep.subr.mxu0 0.0
    %724 = vmatpush1.msra.mxu0 %v660
    %725 = vmatprep.subr.mxu0 0.0
    %726 = vmatpush1.msra.mxu0 %v661
    %727 = vmatprep.subr.mxu0 0.0
    %728 = vmatpush1.msra.mxu0 %v662
    %729 = vmatprep.subr.mxu0 0.0
    %730 = vmatpush1.msra.mxu0 %v663
    %731 = vmatprep.subr.mxu0 0.0
    %732 = vmatpush1.msra.mxu0 %v664
    %733 = vmatprep.subr.mxu0 0.0
    %734 = vmatpush1.msra.mxu0 %v665
    %735 = vmatprep.subr.mxu0 0.0
    %736 = vmatpush1.msra.mxu0 %v666
    %737 = vmatprep.subr.mxu0 0.0
    %738 = vmatpush1.msra.mxu0 %v667
    %739 = vmatprep.mubr.f32.mxu0 %v635
    %740 = vmatmul.mubr.f32.gmra.mrb[0].mxu0 %v634
    %v741 = vpop.f32.mrb[0].mxu0
    %v742 = vadd.f32 %v673, %v741
    %v743 = vpop.f32.mrb[0].mxu0
    %744 = vdwg.mxu0
    %745 = vst [vmem:[#allocation13] sm:$0xff] %v742
    // Predicated region
    $region82: #{tpu_custom_call.1} parent=1 // pred_check
      _
    $region83: #{tpu_custom_call.1} parent=1 // pred_check_branch
      %747 = sbr.rel (0) target = $region85
    $region84: #{tpu_custom_call.1} parent=1 // pred_region
      %s749 = ssub.s32 128, 128
      %750 = vsyncadd [#allocation6], %s749
      %s752 = sshll.u32 [#allocation13], 4
      %s753 = int_to_ptr.vmem [resolvable:$true] %s752
      %755 = dma.vmem_to_hbm [thread:$0]  %s753, 128, %s15, [#allocation6]
    $region85: #{tpu_custom_call.1} parent=1 // pred_fallthru
      _
    // Predicated region
    $region86: #{tpu_custom_call.1} parent=1 // pred_check
      _
    $region87: #{tpu_custom_call.1} parent=1 // pred_check_branch
      %757 = sbr.rel (0) target = $region89
    $region88: #{tpu_custom_call.1} parent=1 // pred_region
      %758 = dma.done [#allocation6], 128
    $region89: #{tpu_custom_call.1} parent=1 // pred_fallthru
      _
    %759 = vsyncpa [#allocation5], 1
    %760 = vsyncpa [#allocation8], 1
    %761 = vsyncpa [#allocation11], 1
    %762 = vsyncpa [#allocation6], 1

</llo_original>
